<compile_context>
chip_gen: v7x
topology: tpu7x:2x2x1
jax: 0.10.0
libtpu: 0.0.40
codegen_flags: <defaults>
</compile_context>

<pallas_src>
import jax
import jax.numpy as jnp
from jax.experimental import pallas as pl
from jax.experimental.pallas import tpu as pltpu


def _round_up(n, m):
    return ((n + m - 1) // m) * m


def _make_fused_mlp_kernel(n_layers, rank1_label):
    """Builds relu(...relu(x@W0 [+ y*w0_lbl] + b0)...@W_L + b_L), all in one body."""

    if rank1_label:

        def kernel(x_ref, y_ref, *refs):
            # refs = (w0_main, w0_label, b0, w1, b1, ..., o_ref)
            o_ref = refs[-1]
            w0, w0_lbl, b0 = refs[0], refs[1], refs[2]
            h = jnp.dot(x_ref[...], w0[...], preferred_element_type=jnp.float32)
            h = h + y_ref[...] * w0_lbl[...] + b0[...]
            h = jnp.maximum(h, 0.0)
            for li in range(1, n_layers):
                w_ref = refs[3 + 2 * (li - 1)]
                b_ref = refs[4 + 2 * (li - 1)]
                h = jnp.dot(h.astype(w_ref.dtype), w_ref[...],
                            preferred_element_type=jnp.float32)
                h = jnp.maximum(h + b_ref[...], 0.0)
            o_ref[...] = h.astype(o_ref.dtype)

    else:

        def kernel(x_ref, *refs):
            # refs = (w0_main(with label row folded in), b0, w1, b1, ..., o_ref)
            o_ref = refs[-1]
            w0, b0 = refs[0], refs[1]
            h = jnp.dot(x_ref[...], w0[...], preferred_element_type=jnp.float32)
            h = jnp.maximum(h + b0[...], 0.0)
            for li in range(1, n_layers):
                w_ref = refs[2 + 2 * (li - 1)]
                b_ref = refs[3 + 2 * (li - 1)]
                h = jnp.dot(h.astype(w_ref.dtype), w_ref[...],
                            preferred_element_type=jnp.float32)
                h = jnp.maximum(h + b_ref[...], 0.0)
            o_ref[...] = h.astype(o_ref.dtype)

    return kernel


def init_dense_directed_params(shapes, key):
    """Deterministic params mimicking torch.nn.Linear init (U[-1/sqrt(fan_in), +])."""
    assert shapes[0] == shapes[-1], "Input and output shapes must be equal"
    dims = list(shapes)
    dims[0] += 1  # extra label feature
    params = []
    for i in range(len(dims) - 1):
        fan_in, fan_out = dims[i], dims[i + 1]
        key, kw, kb = jax.random.split(key, 3)
        bound = 1.0 / float(fan_in) ** 0.5
        # stored transposed: (in_features, out_features)
        w_t = jax.random.uniform(kw, (fan_in, fan_out), jnp.float32, -bound, bound)
        b = jax.random.uniform(kb, (1, fan_out), jnp.float32, -bound, bound)
        params.append((w_t, b))
    return params


def pack_params_for_kernel(params, d_in, compute_dtype=jnp.bfloat16):
    """Pad every dim to a 128 multiple, cast weights to bf16, split/fold label row.

    Returns (flat_param_list, padded_dims, rank1_label).  Zero padding is
    numerically exact for this network (padded columns: zero weight + zero bias).
    """
    dims = [d_in] + [w.shape[1] for (w, _) in params]
    dims_p = [_round_up(d, 128) for d in dims]
    rank1_label = dims_p[0] == d_in  # feature dim already 128-aligned → rank-1 label path

    w0, b0 = params[0]
    assert w0.shape[0] == d_in + 1, "layer 0 must have the extra label feature"

    flat = []
    if rank1_label:
        flat.append(jnp.pad(w0[:d_in], ((0, 0), (0, dims_p[1] - dims[1])))
                    .astype(compute_dtype))                                        # W0 main (bf16)
        flat.append(jnp.pad(w0[d_in:d_in + 1], ((0, 0), (0, dims_p[1] - dims[1])))
                    .astype(jnp.float32))                                          # W0 label row (f32)
        flat.append(jnp.pad(b0, ((0, 0), (0, dims_p[1] - dims[1])))
                    .astype(jnp.float32))                                          # b0 (f32)
    else:
        # Fold the label row into the first zero-padded feature row of W0: the
        # wrapper writes y into feature column d_in, so the MXU applies the
        # label term inside the existing contraction (no rank-1 VPU update).
        w0_main = jnp.zeros((dims_p[0], dims[1]), w0.dtype)
        w0_main = w0_main.at[:d_in].set(w0[:d_in]).at[d_in].set(w0[d_in])
        flat.append(jnp.pad(w0_main, ((0, 0), (0, dims_p[1] - dims[1])))
                    .astype(compute_dtype))
        flat.append(jnp.pad(b0, ((0, 0), (0, dims_p[1] - dims[1])))
                    .astype(jnp.float32))

    for li in range(1, len(params)):
        w, b = params[li]
        flat.append(jnp.pad(w, ((0, dims_p[li] - dims[li]),
                                (0, dims_p[li + 1] - dims[li + 1]))).astype(compute_dtype))
        flat.append(jnp.pad(b, ((0, 0), (0, dims_p[li + 1] - dims[li + 1]))).astype(jnp.float32))
    return flat, dims_p, rank1_label


def dense_directed_forward(params, x, y, *, batch_tile=None, compute_dtype=jnp.bfloat16):
    """x: (B, 1, W, H) float32, y: (B,) float32. Returns (B, 1, W, H) float32."""
    B, C, W, H = x.shape
    assert C == 1
    d_in = W * H
    n_layers = len(params)
    assert params[-1][0].shape[1] == d_in, "Input and output shapes must be equal"

    flat_params, dims_p, rank1_label = pack_params_for_kernel(params, d_in, compute_dtype)
    out_cols = d_in if dims_p[-1] == d_in else dims_p[-1]

    # --- activations (no batch padding; Pallas masks the partial last block) ---
    feat = x.reshape(B, d_in).astype(compute_dtype)          # 'b 1 w h -> b (w h)', bf16
    if not rank1_label:
        feat = jnp.pad(feat, ((0, 0), (0, dims_p[0] - d_in)))
        feat = feat.at[:, d_in].set(y.astype(compute_dtype)) # label folded into padded column

    # --- generation-aware VMEM budgeting / batch tile ---
    try:
        info = pltpu.get_tpu_info()
        vmem_cap = int(getattr(info, "vmem_capacity_bytes", 64 << 20))
    except Exception:  # interpret mode / unknown device
        vmem_cap = 64 << 20
    if batch_tile is None:
        # 128-MiB parts (v5e/v6e) can afford bigger M per step; v7x (64 MiB) keeps 256.
        batch_tile = 512 if vmem_cap >= (100 << 20) else 256

    item = jnp.dtype(compute_dtype).itemsize
    weight_bytes = sum(int(p.size) * p.dtype.itemsize for p in flat_params)  # single-buffered

    def vmem_needed(tb_):
        act = 2 * tb_ * dims_p[0] * item          # double-buffered activation tile
        lbl = 2 * tb_ * 4 if rank1_label else 0   # double-buffered label column
        outb = 2 * tb_ * out_cols * 4             # double-buffered f32 output tile
        inter = 2 * tb_ * max(dims_p) * 4         # f32 inter-layer activations / accumulator
        return weight_bytes + act + lbl + outb + inter

    tb = min(batch_tile, _round_up(B, 8))
    while tb > 8 and vmem_needed(tb) > int(0.85 * vmem_cap):
        tb //= 2
    tb = max(tb, 8)
    vmem_limit = int(vmem_needed(tb) * 1.5) + (4 << 20)
    vmem_limit = max(vmem_limit, 32 << 20)            # never below the default scoped limit
    vmem_limit = min(vmem_limit, int(0.95 * vmem_cap))

    # --- specs ---
    const = dict(pipeline_mode=pl.Buffered(1))  # weights/biases: fetched once, single buffer
    in_specs = [pl.BlockSpec((tb, dims_p[0]), lambda i: (i, 0))]           # activation tile
    operands = [feat]
    if rank1_label:
        in_specs.append(pl.BlockSpec((tb, 1), lambda i: (i, 0)))           # label column
        operands.append(y.reshape(B, 1).astype(jnp.float32))
        in_specs.append(pl.BlockSpec((dims_p[0], dims_p[1]), lambda i: (0, 0), **const))  # W0 main
        in_specs.append(pl.BlockSpec((1, dims_p[1]), lambda i: (0, 0), **const))          # W0 label row
        in_specs.append(pl.BlockSpec((1, dims_p[1]), lambda i: (0, 0), **const))          # b0
    else:
        in_specs.append(pl.BlockSpec((dims_p[0], dims_p[1]), lambda i: (0, 0), **const))  # W0 (folded)
        in_specs.append(pl.BlockSpec((1, dims_p[1]), lambda i: (0, 0), **const))          # b0
    for li in range(1, n_layers):
        in_specs.append(pl.BlockSpec((dims_p[li], dims_p[li + 1]), lambda i: (0, 0), **const))
        in_specs.append(pl.BlockSpec((1, dims_p[li + 1]), lambda i: (0, 0), **const))
    operands.extend(flat_params)

    flops = 2 * B * sum(dims_p[i] * dims_p[i + 1] for i in range(n_layers))
    bytes_accessed = (feat.nbytes + weight_bytes + B * out_cols * 4
                      + (B * 4 if rank1_label else 0))
    cost = pl.CostEstimate(flops=flops, transcendentals=0, bytes_accessed=bytes_accessed)

    out = pl.pallas_call(
        _make_fused_mlp_kernel(n_layers, rank1_label),
        out_shape=jax.ShapeDtypeStruct((B, out_cols), jnp.float32),
        grid=(pl.cdiv(B, tb),),
        in_specs=in_specs,
        out_specs=pl.BlockSpec((tb, out_cols), lambda i: (i, 0)),
        compiler_params=pltpu.CompilerParams(
            dimension_semantics=("parallel",),   # batch tiles shard across TCs on v7x
            vmem_limit_bytes=int(vmem_limit),
        ),
        cost_estimate=cost,
    )(*operands)

    if out_cols != d_in:
        out = out[:, :d_in]
    return out.reshape(B, 1, W, H)               # 'b (w h) -> b 1 w h'


def _reference_forward(params, x, y):
    """Pure f32 reference matching the PyTorch module."""
    B, _, W, H = x.shape
    feat = x.reshape(B, W * H)
    feat = jnp.concatenate([feat, y[:, None]], 1)
    for w_t, b in params:
        feat = jnp.maximum(feat @ w_t + b, 0.0)
    return feat.reshape(B, 1, W, H)


if __name__ == "__main__":
    key = jax.random.PRNGKey(0)
    B, W, H = 2, 16, 16
    hidden = 32
    shapes = (W * H, hidden, W * H)   # input == output, as the module asserts

    kx, ky, kp = jax.random.split(key, 3)
    x = jax.random.normal(kx, (B, 1, W, H), jnp.float32)
    y = jax.random.normal(ky, (B,), jnp.float32)

    params = init_dense_directed_params(shapes, kp)

    out = dense_directed_forward(params, x, y)
    out = jax.block_until_ready(out)

    ref = _reference_forward(params, x, y)
    assert out.shape == (B, 1, W, H)
    # bf16 weights/activations with f32 accumulation: tolerance relaxed vs f32 reference.
    assert jnp.allclose(out, ref, atol=2e-2, rtol=2e-2), float(jnp.max(jnp.abs(out - ref)))

    print("KERNEL_OK")
</pallas_src>

<mosaic_0001>
module attributes {stable_mosaic.version = 11 : i64} {
  func.func @kernel(%arg0: i32, %arg1: memref<8x256xbf16, #tpu.memory_space<vmem>>, %arg2: memref<8x1xf32, #tpu.memory_space<vmem>>, %arg3: memref<256x128xbf16, #tpu.memory_space<vmem>>, %arg4: memref<1x128xf32, #tpu.memory_space<vmem>>, %arg5: memref<1x128xf32, #tpu.memory_space<vmem>>, %arg6: memref<128x256xbf16, #tpu.memory_space<vmem>>, %arg7: memref<1x256xf32, #tpu.memory_space<vmem>>, %arg8: memref<8x256xf32, #tpu.memory_space<vmem>>) attributes {dimension_semantics = [#tpu.dimension_semantics<parallel>], iteration_bounds = array<i64: 1>, scalar_prefetch = 0 : i64, scratch_operands = 0 : i64, tpu.core_type = #tpu.core_type<tc>, window_params = [{transform_indices = @transform_0, window_bounds = array<i64: 8, 256>}, {transform_indices = @transform_1, window_bounds = array<i64: 8, 1>}, {pipeline_mode = #tpu.pipeline_mode<synchronous>, transform_indices = @transform_2, window_bounds = array<i64: 256, 128>}, {pipeline_mode = #tpu.pipeline_mode<synchronous>, transform_indices = @transform_3, window_bounds = array<i64: 1, 128>}, {pipeline_mode = #tpu.pipeline_mode<synchronous>, transform_indices = @transform_4, window_bounds = array<i64: 1, 128>}, {pipeline_mode = #tpu.pipeline_mode<synchronous>, transform_indices = @transform_5, window_bounds = array<i64: 128, 256>}, {pipeline_mode = #tpu.pipeline_mode<synchronous>, transform_indices = @transform_6, window_bounds = array<i64: 1, 256>}, {transform_indices = @transform_7, window_bounds = array<i64: 8, 256>}]} {
    %c0 = arith.constant 0 : index
    %c0_0 = arith.constant 0 : index
    %0 = vector.load %arg1[%c0, %c0_0] : memref<8x256xbf16, #tpu.memory_space<vmem>>, vector<8x256xbf16>
    %c0_1 = arith.constant 0 : index
    %c0_2 = arith.constant 0 : index
    %1 = vector.load %arg3[%c0_1, %c0_2] : memref<256x128xbf16, #tpu.memory_space<vmem>>, vector<256x128xbf16>
    %cst = arith.constant dense<0.000000e+00> : vector<8x128xf32>
    %2 = tpu.matmul %0, %1, %cst {dimension_numbers = #tpu.dot_dimension_numbers<[1], [0], [0], [1], [0, 0, 1, 1], [], []>} : vector<8x256xbf16>, vector<256x128xbf16>, vector<8x128xf32> -> vector<8x128xf32>
    %c0_3 = arith.constant 0 : index
    %c0_4 = arith.constant 0 : index
    %3 = vector.load %arg2[%c0_3, %c0_4] : memref<8x1xf32, #tpu.memory_space<vmem>>, vector<8x1xf32>
    %c0_5 = arith.constant 0 : index
    %c0_6 = arith.constant 0 : index
    %4 = vector.load %arg4[%c0_5, %c0_6] : memref<1x128xf32, #tpu.memory_space<vmem>>, vector<1x128xf32>
    %5 = vector.broadcast %3 : vector<8x1xf32> to vector<8x128xf32>
    %6 = vector.broadcast %4 : vector<1x128xf32> to vector<8x128xf32>
    %7 = arith.mulf %5, %6 : vector<8x128xf32>
    %8 = arith.addf %2, %7 : vector<8x128xf32>
    %c0_7 = arith.constant 0 : index
    %c0_8 = arith.constant 0 : index
    %9 = vector.load %arg5[%c0_7, %c0_8] : memref<1x128xf32, #tpu.memory_space<vmem>>, vector<1x128xf32>
    %10 = vector.broadcast %9 : vector<1x128xf32> to vector<8x128xf32>
    %11 = arith.addf %8, %10 : vector<8x128xf32>
    %cst_9 = arith.constant 0.000000e+00 : f32
    %12 = vector.broadcast %cst_9 : f32 to vector<8x128xf32>
    %13 = arith.maximumf %11, %12 : vector<8x128xf32>
    %14 = arith.truncf %13 : vector<8x128xf32> to vector<8x128xbf16>
    %c0_10 = arith.constant 0 : index
    %c0_11 = arith.constant 0 : index
    %15 = vector.load %arg6[%c0_10, %c0_11] : memref<128x256xbf16, #tpu.memory_space<vmem>>, vector<128x256xbf16>
    %cst_12 = arith.constant dense<0.000000e+00> : vector<8x256xf32>
    %16 = tpu.matmul %14, %15, %cst_12 {dimension_numbers = #tpu.dot_dimension_numbers<[1], [0], [0], [1], [0, 0, 1, 1], [], []>} : vector<8x128xbf16>, vector<128x256xbf16>, vector<8x256xf32> -> vector<8x256xf32>
    %c0_13 = arith.constant 0 : index
    %c0_14 = arith.constant 0 : index
    %17 = vector.load %arg7[%c0_13, %c0_14] : memref<1x256xf32, #tpu.memory_space<vmem>>, vector<1x256xf32>
    %18 = vector.broadcast %17 : vector<1x256xf32> to vector<8x256xf32>
    %19 = arith.addf %16, %18 : vector<8x256xf32>
    %cst_15 = arith.constant 0.000000e+00 : f32
    %20 = vector.broadcast %cst_15 : f32 to vector<8x256xf32>
    %21 = arith.maximumf %19, %20 : vector<8x256xf32>
    %c0_16 = arith.constant 0 : index
    %c0_17 = arith.constant 0 : index
    %22 = vector.load %arg8[%c0_16, %c0_17] : memref<8x256xf32, #tpu.memory_space<vmem>>, vector<8x256xf32>
    tpu.vector_store %arg8[%c0_16, %c0_17], %21 {strides = array<i32>} : memref<8x256xf32, #tpu.memory_space<vmem>>, vector<8x256xf32>,
    return
  }
  func.func @transform_0(%arg0: i32) -> (i32, i32) {
    %c0_i32 = arith.constant 0 : i32
    %c0_i32_0 = arith.constant 0 : i32
    return %arg0, %c0_i32 : i32, i32
  }
  func.func @transform_1(%arg0: i32) -> (i32, i32) {
    %c0_i32 = arith.constant 0 : i32
    %c0_i32_0 = arith.constant 0 : i32
    return %arg0, %c0_i32 : i32, i32
  }
  func.func @transform_2(%arg0: i32) -> (i32, i32) {
    %c0_i32 = arith.constant 0 : i32
    %c0_i32_0 = arith.constant 0 : i32
    %c0_i32_1 = arith.constant 0 : i32
    return %c0_i32, %c0_i32_0 : i32, i32
  }
  func.func @transform_3(%arg0: i32) -> (i32, i32) {
    %c0_i32 = arith.constant 0 : i32
    %c0_i32_0 = arith.constant 0 : i32
    %c0_i32_1 = arith.constant 0 : i32
    return %c0_i32, %c0_i32_0 : i32, i32
  }
  func.func @transform_4(%arg0: i32) -> (i32, i32) {
    %c0_i32 = arith.constant 0 : i32
    %c0_i32_0 = arith.constant 0 : i32
    %c0_i32_1 = arith.constant 0 : i32
    return %c0_i32, %c0_i32_0 : i32, i32
  }
  func.func @transform_5(%arg0: i32) -> (i32, i32) {
    %c0_i32 = arith.constant 0 : i32
    %c0_i32_0 = arith.constant 0 : i32
    %c0_i32_1 = arith.constant 0 : i32
    return %c0_i32, %c0_i32_0 : i32, i32
  }
  func.func @transform_6(%arg0: i32) -> (i32, i32) {
    %c0_i32 = arith.constant 0 : i32
    %c0_i32_0 = arith.constant 0 : i32
    %c0_i32_1 = arith.constant 0 : i32
    return %c0_i32, %c0_i32_0 : i32, i32
  }
  func.func @transform_7(%arg0: i32) -> (i32, i32) {
    %c0_i32 = arith.constant 0 : i32
    %c0_i32_0 = arith.constant 0 : i32
    return %arg0, %c0_i32 : i32, i32
  }
}

</mosaic_0001>

<llo_original>
// kernel: tpu_custom_call.1
$region0: #{tpu_custom_call.1}
  #allocation0 [shape = 'u32[]', space=smem, size = 0x4, offset = 0x4, fixed_abs, tag = 'smem constant byte address 0x4 - core index']
  #allocation1 [shape = 'u32[144,128]{1,0:T(1,128)}', space=vmem, size = 0x12000, scoped, tag = 'internal scratch']
  %s0 = inlined_call_operand.vmem [shape: bf16[2,256], index: 0, kind: input, shape index: {}]
  %s1 = inlined_call_operand.vmem [shape: f32[2,1], index: 1, kind: input, shape index: {}]
  %s2 = inlined_call_operand.hbm [shape: bf16[256,128], index: 2, kind: input, shape index: {}]
  %s3 = inlined_call_operand.vmem [shape: f32[1,128], index: 3, kind: input, shape index: {}]
  %s4 = inlined_call_operand.vmem [shape: f32[1,128], index: 4, kind: input, shape index: {}]
  %s5 = inlined_call_operand.hbm [shape: bf16[128,256], index: 5, kind: input, shape index: {}]
  %s6 = inlined_call_operand.vmem [shape: f32[1,256], index: 6, kind: input, shape index: {}]
  %s7 = inlined_call_operand.hbm [shape: f32[2,256], index: 7, kind: output, shape index: {}]
  %s8 = sld [smem:[#allocation0]]
  $region46: #{tpu_custom_call.1} parent=0
    _
  %s10 = ssub.s32 1, %s8
  %s11 = scalar_select 0, %s10, %s8
  $region1: #{tpu_custom_call.1} parent=0
    #allocation2 [shape = 'u8[65536]{0}', space=vmem, size = 0x10000, scoped, tag = 'input window, operand 2, single buffered']
    #allocation3 [shape = 's32[1]{0}', space=sflag, size = 0x4, scoped, tag = 'scoped memory for tpu_custom_call.1']
    #allocation4 [shape = 's32[1]{0}', space=sflag, size = 0x4, scoped, tag = 'scoped memory for tpu_custom_call.1']
    #allocation5 [shape = 'u8[65536]{0}', space=vmem, size = 0x10000, scoped, tag = 'input window, operand 5, single buffered']
    #allocation6 [shape = 's32[1]{0}', space=sflag, size = 0x4, scoped, tag = 'scoped memory for tpu_custom_call.1']
    #allocation7 [shape = 'u8[8192]{0}', space=vmem, size = 0x2000, scoped, tag = 'output window, operand 0, single buffered']
    %12 = vsyncpa [#allocation3], 0
    %13 = vsyncpa [#allocation6], 0
    %14 = vsyncpa [#allocation4], 0
    // Predicated region
    $region2: #{tpu_custom_call.1} parent=1 // pred_check
      _
    $region3: #{tpu_custom_call.1} parent=1 // pred_check_branch
      %16 = sbr.rel (0) target = $region5
    $region4: #{tpu_custom_call.1} parent=1 // pred_region
      _
    $region5: #{tpu_custom_call.1} parent=1 // pred_fallthru
      _
    // Predicated region
    $region6: #{tpu_custom_call.1} parent=1 // pred_check
      _
    $region7: #{tpu_custom_call.1} parent=1 // pred_check_branch
      %18 = sbr.rel (0) target = $region9
    $region8: #{tpu_custom_call.1} parent=1 // pred_region
      _
    $region9: #{tpu_custom_call.1} parent=1 // pred_fallthru
      _
    // Predicated region
    $region10: #{tpu_custom_call.1} parent=1 // pred_check
      _
    $region11: #{tpu_custom_call.1} parent=1 // pred_check_branch
      %20 = sbr.rel (0) target = $region13
    $region12: #{tpu_custom_call.1} parent=1 // pred_region
      %s22 = ssub.s32 2048, 2048
      %23 = vsyncadd [#allocation3], %s22
      %s24 = sshll.u32 [#allocation2], 4
      %s25 = int_to_ptr.vmem [resolvable:$true] %s24
      %30 = dma.hbm_to_vmem [thread:$0]  %s2, 2048, %s25, [#allocation3], 64, 64, 4
    $region13: #{tpu_custom_call.1} parent=1 // pred_fallthru
      _
    // Predicated region
    $region14: #{tpu_custom_call.1} parent=1 // pred_check
      _
    $region15: #{tpu_custom_call.1} parent=1 // pred_check_branch
      %32 = sbr.rel (0) target = $region17
    $region16: #{tpu_custom_call.1} parent=1 // pred_region
      _
    $region17: #{tpu_custom_call.1} parent=1 // pred_fallthru
      _
    // Predicated region
    $region18: #{tpu_custom_call.1} parent=1 // pred_check
      _
    $region19: #{tpu_custom_call.1} parent=1 // pred_check_branch
      %34 = sbr.rel (0) target = $region21
    $region20: #{tpu_custom_call.1} parent=1 // pred_region
      _
    $region21: #{tpu_custom_call.1} parent=1 // pred_fallthru
      _
    // Predicated region
    $region22: #{tpu_custom_call.1} parent=1 // pred_check
      _
    $region23: #{tpu_custom_call.1} parent=1 // pred_check_branch
      %36 = sbr.rel (0) target = $region25
    $region24: #{tpu_custom_call.1} parent=1 // pred_region
      %s38 = ssub.s32 2048, 2048
      %39 = vsyncadd [#allocation6], %s38
      %s40 = sshll.u32 [#allocation5], 4
      %s41 = int_to_ptr.vmem [resolvable:$true] %s40
      %46 = dma.hbm_to_vmem [thread:$0]  %s5, 2048, %s41, [#allocation6], 128, 128, 8
    $region25: #{tpu_custom_call.1} parent=1 // pred_fallthru
      _
    // Predicated region
    $region26: #{tpu_custom_call.1} parent=1 // pred_check
      _
    $region27: #{tpu_custom_call.1} parent=1 // pred_check_branch
      %48 = sbr.rel (0) target = $region29
    $region28: #{tpu_custom_call.1} parent=1 // pred_region
      _
    $region29: #{tpu_custom_call.1} parent=1 // pred_fallthru
      _
    // Predicated region
    $region30: #{tpu_custom_call.1} parent=1 // pred_check
      _
    $region31: #{tpu_custom_call.1} parent=1 // pred_check_branch
      %50 = sbr.rel (0) target = $region33
    $region32: #{tpu_custom_call.1} parent=1 // pred_region
      %51 = dma.done [#allocation3], 2048
    $region33: #{tpu_custom_call.1} parent=1 // pred_fallthru
      _
    // Predicated region
    $region34: #{tpu_custom_call.1} parent=1 // pred_check
      _
    $region35: #{tpu_custom_call.1} parent=1 // pred_check_branch
      %53 = sbr.rel (0) target = $region37
    $region36: #{tpu_custom_call.1} parent=1 // pred_region
      %54 = dma.done [#allocation6], 2048
    $region37: #{tpu_custom_call.1} parent=1 // pred_fallthru
      _
    %v56 = vld [vmem:[%s0] sm:$0x3]
    %v57 = vld [vmem:[%s0 + $0x2] sm:$0x3]
    %v58 = vld [vmem:[%s0 + $0x4] sm:$0x3]
    %v59 = vld [vmem:[%s0 + $0x6] sm:$0x3]
    %v60 = vld [vmem:[#allocation2] sm:$0xf]
    %v61 = vld [vmem:[#allocation2 + $0x4] sm:$0xf]
    %v62 = vld [vmem:[#allocation2 + $0x8] sm:$0xf]
    %v63 = vld [vmem:[#allocation2 + $0xc] sm:$0xf]
    %v64 = vld [vmem:[#allocation2 + $0x10] sm:$0xf]
    %v65 = vld [vmem:[#allocation2 + $0x14] sm:$0xf]
    %v66 = vld [vmem:[#allocation2 + $0x18] sm:$0xf]
    %v67 = vld [vmem:[#allocation2 + $0x1c] sm:$0xf]
    %v68 = vld [vmem:[#allocation2 + $0x20] sm:$0xf]
    %v69 = vld [vmem:[#allocation2 + $0x24] sm:$0xf]
    %v70 = vld [vmem:[#allocation2 + $0x28] sm:$0xf]
    %v71 = vld [vmem:[#allocation2 + $0x2c] sm:$0xf]
    %v72 = vld [vmem:[#allocation2 + $0x30] sm:$0xf]
    %v73 = vld [vmem:[#allocation2 + $0x34] sm:$0xf]
    %v74 = vld [vmem:[#allocation2 + $0x38] sm:$0xf]
    %v75 = vld [vmem:[#allocation2 + $0x3c] sm:$0xf]
    %v76 = vld [vmem:[#allocation2 + $0x40] sm:$0xf]
    %v77 = vld [vmem:[#allocation2 + $0x44] sm:$0xf]
    %v78 = vld [vmem:[#allocation2 + $0x48] sm:$0xf]
    %v79 = vld [vmem:[#allocation2 + $0x4c] sm:$0xf]
    %v80 = vld [vmem:[#allocation2 + $0x50] sm:$0xf]
    %v81 = vld [vmem:[#allocation2 + $0x54] sm:$0xf]
    %v82 = vld [vmem:[#allocation2 + $0x58] sm:$0xf]
    %v83 = vld [vmem:[#allocation2 + $0x5c] sm:$0xf]
    %v84 = vld [vmem:[#allocation2 + $0x60] sm:$0xf]
    %v85 = vld [vmem:[#allocation2 + $0x64] sm:$0xf]
    %v86 = vld [vmem:[#allocation2 + $0x68] sm:$0xf]
    %v87 = vld [vmem:[#allocation2 + $0x6c] sm:$0xf]
    %v88 = vld [vmem:[#allocation2 + $0x70] sm:$0xf]
    %v89 = vld [vmem:[#allocation2 + $0x74] sm:$0xf]
    %v90 = vld [vmem:[#allocation2 + $0x78] sm:$0xf]
    %v91 = vld [vmem:[#allocation2 + $0x7c] sm:$0xf]
    %v92 = vld [vmem:[%s1] sm:$0xff]
    %v93 = vld [vmem:[%s3] sm:$0x1]
    %95 = vset.pattern.permute.xlu0 0
    %96 = vperm.xlu0 %95, %v92
    %v97 = vpop.permute.xlu0 %96
    %v100 = vlaneseq
    %v101 = vshrl.u32 %v100, 7
    %v102 = vsub.s32 0, %v101
    %v103 = vrot.slane %v93, %v102
    %v105 = vmul.f32 %v97, %v103
    %v110 = vcombine.low %v56, %v57
    %v111 = vcombine.low %v58, %v59
    %v113 = vunpack.c.l.s4 1966171168
    %v114 = vunpack.c.0.s8 %v113
    %v115 = vlaneseq
    %v116 = vshrl.u32 %v115, 7
    %v117 = vsub.s32 %v114, %v116
    %v118 = vrot.slane %v110, %v117
    %v120 = vunpack.c.l.s4 1966171168
    %v121 = vunpack.c.0.s8 %v120
    %v122 = vlaneseq
    %v123 = vshrl.u32 %v122, 7
    %v124 = vsub.s32 %v121, %v123
    %v125 = vrot.slane %v111, %v124
    %v126 = vcombine.low %v118, %v125
    %v127 = vcombine.high %v118, %v125
    %v129 = vunpack.c.l.s4 1966171168
    %v130 = vunpack.c.0.s8 %v129
    %v131 = vlaneseq
    %v132 = vshrl.u32 %v131, 7
    %v133 = vsub.s32 %v130, %v132
    %v134 = vrot.slane %v126, %v133
    %v136 = vunpack.c.l.s4 1966171168
    %v137 = vunpack.c.0.s8 %v136
    %v138 = vlaneseq
    %v139 = vshrl.u32 %v138, 7
    %v140 = vsub.s32 %v137, %v139
    %v141 = vrot.slane %v127, %v140
    %v176 = vunpack.c.l.b16 %v60
    %v177 = vunpack.c.l.b16 %v61
    %v178 = vunpack.c.l.b16 %v62
    %v179 = vunpack.c.l.b16 %v63
    %v180 = vunpack.c.l.b16 %v64
    %v181 = vunpack.c.l.b16 %v65
    %v182 = vunpack.c.l.b16 %v66
    %v183 = vunpack.c.l.b16 %v67
    %v184 = vunpack.c.l.b16 %v68
    %v185 = vunpack.c.l.b16 %v69
    %v186 = vunpack.c.l.b16 %v70
    %v187 = vunpack.c.l.b16 %v71
    %v188 = vunpack.c.l.b16 %v72
    %v189 = vunpack.c.l.b16 %v73
    %v190 = vunpack.c.l.b16 %v74
    %v191 = vunpack.c.l.b16 %v75
    %v192 = vunpack.c.l.b16 %v76
    %v193 = vunpack.c.l.b16 %v77
    %v194 = vunpack.c.l.b16 %v78
    %v195 = vunpack.c.l.b16 %v79
    %v196 = vunpack.c.l.b16 %v80
    %v197 = vunpack.c.l.b16 %v81
    %v198 = vunpack.c.l.b16 %v82
    %v199 = vunpack.c.l.b16 %v83
    %v200 = vunpack.c.l.b16 %v84
    %v201 = vunpack.c.l.b16 %v85
    %v202 = vunpack.c.l.b16 %v86
    %v203 = vunpack.c.l.b16 %v87
    %v204 = vunpack.c.l.b16 %v88
    %v205 = vunpack.c.l.b16 %v89
    %v206 = vunpack.c.l.b16 %v90
    %v207 = vunpack.c.l.b16 %v91
    %v208 = vpack.c.b16 %v177, %v176
    %v209 = vpack.c.b16 %v179, %v178
    %v210 = vpack.c.b16 %v181, %v180
    %v211 = vpack.c.b16 %v183, %v182
    %v212 = vpack.c.b16 %v185, %v184
    %v213 = vpack.c.b16 %v187, %v186
    %v214 = vpack.c.b16 %v189, %v188
    %v215 = vpack.c.b16 %v191, %v190
    %v216 = vpack.c.b16 %v193, %v192
    %v217 = vpack.c.b16 %v195, %v194
    %v218 = vpack.c.b16 %v197, %v196
    %v219 = vpack.c.b16 %v199, %v198
    %v220 = vpack.c.b16 %v201, %v200
    %v221 = vpack.c.b16 %v203, %v202
    %v222 = vpack.c.b16 %v205, %v204
    %v223 = vpack.c.b16 %v207, %v206
    %240 = vmatprep.subr.bf16.mxu0 0
    %241 = vmatpush1.bf16.msra.mxu0 %v208
    %242 = vmatprep.subr.bf16.mxu0 0
    %243 = vmatpush1.bf16.msra.mxu0 %v209
    %244 = vmatprep.subr.bf16.mxu0 0
    %245 = vmatpush1.bf16.msra.mxu0 %v210
    %246 = vmatprep.subr.bf16.mxu0 0
    %247 = vmatpush1.bf16.msra.mxu0 %v211
    %248 = vmatprep.subr.bf16.mxu0 0
    %249 = vmatpush1.bf16.msra.mxu0 %v212
    %250 = vmatprep.subr.bf16.mxu0 0
    %251 = vmatpush1.bf16.msra.mxu0 %v213
    %252 = vmatprep.subr.bf16.mxu0 0
    %253 = vmatpush1.bf16.msra.mxu0 %v214
    %254 = vmatprep.subr.bf16.mxu0 0
    %255 = vmatpush1.bf16.msra.mxu0 %v215
    %256 = vmatprep.subr.bf16.mxu0 0
    %257 = vmatpush1.bf16.msra.mxu0 %v216
    %258 = vmatprep.subr.bf16.mxu0 0
    %259 = vmatpush1.bf16.msra.mxu0 %v217
    %260 = vmatprep.subr.bf16.mxu0 0
    %261 = vmatpush1.bf16.msra.mxu0 %v218
    %262 = vmatprep.subr.bf16.mxu0 0
    %263 = vmatpush1.bf16.msra.mxu0 %v219
    %264 = vmatprep.subr.bf16.mxu0 0
    %265 = vmatpush1.bf16.msra.mxu0 %v220
    %266 = vmatprep.subr.bf16.mxu0 0
    %267 = vmatpush1.bf16.msra.mxu0 %v221
    %268 = vmatprep.subr.bf16.mxu0 0
    %269 = vmatpush1.bf16.msra.mxu0 %v222
    %270 = vmatprep.subr.bf16.mxu0 0
    %271 = vmatpush1.bf16.msra.mxu0 %v223
    %272 = vmatprep.mubr.bf16.mxu0 %v141
    %273 = vmatmul.mubr.bf16.gmra.mrb[0].mxu0 %v134
    %v274 = vpop.f32.mrb[0].mxu0
    %v275 = vadd.f32 %v105, %v274
    %v276 = vpop.f32.mrb[0].mxu0
    %v277 = vpop.f32.mrb[0].mxu0
    %v278 = vpop.f32.mrb[0].mxu0
    %279 = vdwg.mxu0
    %v280 = vld [vmem:[%s4] sm:$0x1]
    %v282 = vlaneseq
    %v283 = vshrl.u32 %v282, 7
    %v284 = vsub.s32 0, %v283
    %v285 = vrot.slane %v280, %v284
    %v287 = vadd.f32 %v275, %v285
    %v288 = vmax.f32 %v287, 0.0
    %v289 = vpack.c.bf16 %v288, %v288
    %v290 = vld [vmem:[#allocation5] sm:$0xff]
    %v291 = vld [vmem:[#allocation5 + $0x8] sm:$0xff]
    %v292 = vld [vmem:[#allocation5 + $0x10] sm:$0xff]
    %v293 = vld [vmem:[#allocation5 + $0x18] sm:$0xff]
    %v294 = vld [vmem:[#allocation5 + $0x20] sm:$0xff]
    %v295 = vld [vmem:[#allocation5 + $0x28] sm:$0xff]
    %v296 = vld [vmem:[#allocation5 + $0x30] sm:$0xff]
    %v297 = vld [vmem:[#allocation5 + $0x38] sm:$0xff]
    %v298 = vld [vmem:[#allocation5 + $0x40] sm:$0xff]
    %v299 = vld [vmem:[#allocation5 + $0x48] sm:$0xff]
    %v300 = vld [vmem:[#allocation5 + $0x50] sm:$0xff]
    %v301 = vld [vmem:[#allocation5 + $0x58] sm:$0xff]
    %v302 = vld [vmem:[#allocation5 + $0x60] sm:$0xff]
    %v303 = vld [vmem:[#allocation5 + $0x68] sm:$0xff]
    %v304 = vld [vmem:[#allocation5 + $0x70] sm:$0xff]
    %v305 = vld [vmem:[#allocation5 + $0x78] sm:$0xff]
    %v306 = vld [vmem:[%s6] sm:$0x3]
    %v308 = vlaneseq
    %v309 = vshrl.u32 %v308, 7
    %v310 = vsub.s32 0, %v309
    %v311 = vrot.slane %v306, %v310
    %v312 = vlaneseq
    %v313 = vshrl.u32 %v312, 7
    %v314 = vsub.s32 1, %v313
    %v315 = vrot.slane %v306, %v314
    %v334 = vunpack.c.l.b16 %v290
    %v335 = vunpack.c.h.b16 %v290
    %v336 = vunpack.c.l.b16 %v291
    %v337 = vunpack.c.h.b16 %v291
    %v338 = vunpack.c.l.b16 %v292
    %v339 = vunpack.c.h.b16 %v292
    %v340 = vunpack.c.l.b16 %v293
    %v341 = vunpack.c.h.b16 %v293
    %v342 = vunpack.c.l.b16 %v294
    %v343 = vunpack.c.h.b16 %v294
    %v344 = vunpack.c.l.b16 %v295
    %v345 = vunpack.c.h.b16 %v295
    %v346 = vunpack.c.l.b16 %v296
    %v347 = vunpack.c.h.b16 %v296
    %v348 = vunpack.c.l.b16 %v297
    %v349 = vunpack.c.h.b16 %v297
    %v350 = vunpack.c.l.b16 %v298
    %v351 = vunpack.c.h.b16 %v298
    %v352 = vunpack.c.l.b16 %v299
    %v353 = vunpack.c.h.b16 %v299
    %v354 = vunpack.c.l.b16 %v300
    %v355 = vunpack.c.h.b16 %v300
    %v356 = vunpack.c.l.b16 %v301
    %v357 = vunpack.c.h.b16 %v301
    %v358 = vunpack.c.l.b16 %v302
    %v359 = vunpack.c.h.b16 %v302
    %v360 = vunpack.c.l.b16 %v303
    %v361 = vunpack.c.h.b16 %v303
    %v362 = vunpack.c.l.b16 %v304
    %v363 = vunpack.c.h.b16 %v304
    %v364 = vunpack.c.l.b16 %v305
    %v365 = vunpack.c.h.b16 %v305
    %v366 = vpack.c.b16 %v336, %v334
    %v367 = vpack.c.b16 %v337, %v335
    %v368 = vpack.c.b16 %v340, %v338
    %v369 = vpack.c.b16 %v341, %v339
    %v370 = vpack.c.b16 %v344, %v342
    %v371 = vpack.c.b16 %v345, %v343
    %v372 = vpack.c.b16 %v348, %v346
    %v373 = vpack.c.b16 %v349, %v347
    %v374 = vpack.c.b16 %v352, %v350
    %v375 = vpack.c.b16 %v353, %v351
    %v376 = vpack.c.b16 %v356, %v354
    %v377 = vpack.c.b16 %v357, %v355
    %v378 = vpack.c.b16 %v360, %v358
    %v379 = vpack.c.b16 %v361, %v359
    %v380 = vpack.c.b16 %v364, %v362
    %v381 = vpack.c.b16 %v365, %v363
    %398 = vmatprep.subr.bf16.mxu0 %v367
    %399 = vmatpush1.bf16.msra.mxu0 %v366
    %400 = vmatprep.subr.bf16.mxu0 %v369
    %401 = vmatpush1.bf16.msra.mxu0 %v368
    %402 = vmatprep.subr.bf16.mxu0 %v371
    %403 = vmatpush1.bf16.msra.mxu0 %v370
    %404 = vmatprep.subr.bf16.mxu0 %v373
    %405 = vmatpush1.bf16.msra.mxu0 %v372
    %406 = vmatprep.subr.bf16.mxu0 %v375
    %407 = vmatpush1.bf16.msra.mxu0 %v374
    %408 = vmatprep.subr.bf16.mxu0 %v377
    %409 = vmatpush1.bf16.msra.mxu0 %v376
    %410 = vmatprep.subr.bf16.mxu0 %v379
    %411 = vmatpush1.bf16.msra.mxu0 %v378
    %412 = vmatprep.subr.bf16.mxu0 %v381
    %413 = vmatpush1.bf16.msra.mxu0 %v380
    %414 = vmatprep.subr.bf16.mxu0 0
    %415 = vmatpush1.bf16.msra.mxu0 0
    %416 = vmatprep.subr.bf16.mxu0 0
    %417 = vmatpush1.bf16.msra.mxu0 0
    %418 = vmatprep.subr.bf16.mxu0 0
    %419 = vmatpush1.bf16.msra.mxu0 0
    %420 = vmatprep.subr.bf16.mxu0 0
    %421 = vmatpush1.bf16.msra.mxu0 0
    %422 = vmatprep.subr.bf16.mxu0 0
    %423 = vmatpush1.bf16.msra.mxu0 0
    %424 = vmatprep.subr.bf16.mxu0 0
    %425 = vmatpush1.bf16.msra.mxu0 0
    %426 = vmatprep.subr.bf16.mxu0 0
    %427 = vmatpush1.bf16.msra.mxu0 0
    %428 = vmatprep.subr.bf16.mxu0 0
    %429 = vmatpush1.bf16.msra.mxu0 0
    %430 = vmatprep.mubr.bf16.mxu0 0
    %431 = vmatmul.mubr.bf16.gmra.mrb[0].mxu0 %v289
    %v432 = vpop.f32.mrb[0].mxu0
    %v433 = vadd.f32 %v311, %v432
    %v434 = vpop.f32.mrb[0].mxu0
    %v435 = vadd.f32 %v315, %v434
    %v436 = vpop.f32.mrb[0].mxu0
    %v437 = vpop.f32.mrb[0].mxu0
    %438 = vdwg.mxu0
    %v439 = vmax.f32 %v433, 0.0
    %v440 = vmax.f32 %v435, 0.0
    %v443 = vcombine.low %v439, %v440
    %v444 = vcombine.high %v439, %v440
    %v446 = vunpack.c.l.s4 1983009808
    %v447 = vunpack.c.0.s8 %v446
    %v448 = vlaneseq
    %v449 = vshrl.u32 %v448, 7
    %v450 = vsub.s32 %v447, %v449
    %v451 = vrot.slane %v443, %v450
    %v453 = vunpack.c.l.s4 1983009808
    %v454 = vunpack.c.0.s8 %v453
    %v455 = vlaneseq
    %v456 = vshrl.u32 %v455, 7
    %v457 = vsub.s32 %v454, %v456
    %v458 = vrot.slane %v444, %v457
    %v459 = vcombine.high %v451, %v451
    %v460 = vcombine.high %v458, %v458
    %465 = vst [vmem:[#allocation7] sm:$0xf] %v451
    %466 = vst [vmem:[#allocation7 + $0x4] sm:$0xf] %v459
    %467 = vst [vmem:[#allocation7 + $0x8] sm:$0xf] %v458
    %468 = vst [vmem:[#allocation7 + $0xc] sm:$0xf] %v460
    // Predicated region
    $region38: #{tpu_custom_call.1} parent=1 // pred_check
      _
    $region39: #{tpu_custom_call.1} parent=1 // pred_check_branch
      %470 = sbr.rel (0) target = $region41
    $region40: #{tpu_custom_call.1} parent=1 // pred_region
      %s472 = ssub.s32 256, 64
      %473 = vsyncadd [#allocation4], %s472
      %s474 = sshll.u32 [#allocation7], 4
      %s475 = int_to_ptr.vmem [resolvable:$true] %s474
      %480 = dma.vmem_to_hbm [thread:$0]  %s475, 64, %s7, [#allocation4], 64, 64, 4
    $region41: #{tpu_custom_call.1} parent=1 // pred_fallthru
      _
    // Predicated region
    $region42: #{tpu_custom_call.1} parent=1 // pred_check
      _
    $region43: #{tpu_custom_call.1} parent=1 // pred_check_branch
      %482 = sbr.rel (0) target = $region45
    $region44: #{tpu_custom_call.1} parent=1 // pred_region
      %483 = dma.done [#allocation4], 256
    $region45: #{tpu_custom_call.1} parent=1 // pred_fallthru
      _
    %484 = vsyncpa [#allocation3], 1
    %485 = vsyncpa [#allocation6], 1
    %486 = vsyncpa [#allocation4], 1

</llo_original>
